<compile_context>
chip_gen: v6e
topology: v6e:2x2x1
jax: 0.10.0
libtpu: 0.0.40
codegen_flags: <defaults>
</compile_context>

<pallas_src>
import functools

import jax
import jax.numpy as jnp
from jax import lax
from jax.experimental import pallas as pl
from jax.experimental.pallas import tpu as pltpu


def _kqv_attn_kernel(xq_ref, xkv_ref, w_ref, b_ref, o_ref, k_sc, v_sc,
                     *, d_pad, s_valid, s_pad):
    """One (batch, q-tile) grid step.

    xq_ref : (TQ, Dp)      bf16  query rows for this tile
    xkv_ref: (S_pad, Dp)   bf16  full (padded) sequence, source of K/V
    w_ref  : (Dp, 3*Dp)    bf16  pre-transposed fused weights [Wk.T | Wv.T | Wq.T]
    b_ref  : (1, 3*Dp)     f32   fused bias [bk | bv | bq]
    o_ref  : (TQ, Dp)
    k_sc   : (S_pad, Dp)   bf16  persistent K cache (valid for current batch)
    v_sc   : (S_pad, Dp)   bf16  persistent V cache (valid for current batch)
    """
    qi = pl.program_id(1)

    # Project K/V only on the first q-tile of each batch element; the scratch
    # persists across the (sequential, "arbitrary") q-tile axis.
    @pl.when(qi == 0)
    def _():
        kv = jnp.dot(xkv_ref[...], w_ref[:, : 2 * d_pad],
                     preferred_element_type=jnp.float32) + b_ref[:, : 2 * d_pad]
        k_sc[...] = kv[:, :d_pad].astype(k_sc.dtype)
        v_sc[...] = kv[:, d_pad:].astype(v_sc.dtype)

    # Q projection for this tile only.
    q = jnp.dot(xq_ref[...], w_ref[:, 2 * d_pad:],
                preferred_element_type=jnp.float32) + b_ref[:, 2 * d_pad:]

    # scores = q @ k^T without any transpose: contract feature axis of both.
    scores = lax.dot_general(
        q.astype(jnp.bfloat16), k_sc[...],
        dimension_numbers=(((1,), (1,)), ((), ())),
        preferred_element_type=jnp.float32)                 # (TQ, S_pad) f32

    if s_pad > s_valid:  # static branch: mask padded key positions
        key_idx = lax.broadcasted_iota(jnp.int32, scores.shape, 1)
        scores = jnp.where(key_idx < s_valid, scores, -1e30)

    # Softmax statistics in f32 (no 1/sqrt(d) scaling — matches the module).
    m = jnp.max(scores, axis=-1, keepdims=True)
    p = jnp.exp(scores - m)
    denom = jnp.sum(p, axis=-1, keepdims=True)              # (TQ, 1)

    # Un-normalized p @ v (bf16 MXU), then scale the small (TQ, Dp) result once
    # with an EUP approx reciprocal instead of normalizing the (TQ, S) weights.
    out = jnp.dot(p.astype(jnp.bfloat16), v_sc[...],
                  preferred_element_type=jnp.float32)       # (TQ, Dp) f32
    out = out * pl.reciprocal(denom, approx=True)
    o_ref[...] = out.astype(o_ref.dtype)


def kqv_self_attention(x, wk, bk, wq, bq, wv, bv):
    B, S, D = x.shape

    # Lane-dense feature padding (multiple of 128) and q-tile sizing.
    d_pad = max(128, ((D + 127) // 128) * 128)
    if S <= 128:
        s_pad = ((S + 7) // 8) * 8
        tq = s_pad
    else:
        tq = 128
        s_pad = ((S + tq - 1) // tq) * tq
    n_q_tiles = s_pad // tq
    # TODO(synk): for very large S, replace the full-key-axis scores with an
    # online-softmax (flash-style) inner loop over K/V tiles to bound VMEM.

    def pad_w(w):   # pre-transpose + zero-pad to (d_pad, d_pad)
        return jnp.pad(w.T, ((0, d_pad - D), (0, d_pad - D)))

    def pad_b(b):
        return jnp.pad(b, (0, d_pad - D))

    # Fused, pre-transposed weights [Wk.T | Wv.T | Wq.T] in bf16; bias stays f32.
    w_fused = jnp.concatenate([pad_w(wk), pad_w(wv), pad_w(wq)], axis=1)
    w_fused = w_fused.astype(jnp.bfloat16)
    b_fused = jnp.concatenate([pad_b(bk), pad_b(bv), pad_b(bq)])
    b_fused = b_fused.reshape(1, 3 * d_pad).astype(jnp.float32)

    # Pad x once in the wrapper; bf16 operands for the MXU.
    x_p = jnp.pad(x, ((0, 0), (0, s_pad - S), (0, d_pad - D))).astype(jnp.bfloat16)

    kernel = functools.partial(_kqv_attn_kernel, d_pad=d_pad, s_valid=S, s_pad=s_pad)

    out = pl.pallas_call(
        kernel,
        out_shape=jax.ShapeDtypeStruct((B, s_pad, d_pad), x.dtype),
        grid_spec=pltpu.PrefetchScalarGridSpec(
            num_scalar_prefetch=0,
            grid=(B, n_q_tiles),
            in_specs=[
                # q-tile view of x
                pl.BlockSpec((pl.Squeezed(), tq, d_pad), lambda b, qi: (b, qi, 0)),
                # full-sequence view of x for K/V (block index constant in qi →
                # re-fetched only when the batch index changes)
                pl.BlockSpec((pl.Squeezed(), s_pad, d_pad), lambda b, qi: (b, 0, 0)),
                pl.BlockSpec((d_pad, 3 * d_pad), lambda b, qi: (0, 0)),   # fused W
                pl.BlockSpec((1, 3 * d_pad), lambda b, qi: (0, 0)),       # fused bias
            ],
            out_specs=pl.BlockSpec((pl.Squeezed(), tq, d_pad),
                                   lambda b, qi: (b, qi, 0)),
            scratch_shapes=[
                pltpu.VMEM((s_pad, d_pad), jnp.bfloat16),   # K cache
                pltpu.VMEM((s_pad, d_pad), jnp.bfloat16),   # V cache
            ],
        ),
        compiler_params=pltpu.CompilerParams(
            # Batch axis shards across TensorCores; q-tile axis must be
            # sequential so the per-batch K/V scratch cache is valid.
            dimension_semantics=("parallel", "arbitrary"),
            vmem_limit_bytes=32 * 1024 * 1024,
        ),
    )(x_p, x_p, w_fused, b_fused)

    return out[:, :S, :D]


def _reference(x, wk, bk, wq, bq, wv, bv):
    k = x @ wk.T + bk
    q = x @ wq.T + bq
    v = x @ wv.T + bv
    scores = q @ jnp.swapaxes(k, -2, -1)
    w = jax.nn.softmax(scores, axis=-1)
    return w @ v


if __name__ == "__main__":
    B, S, D = 2, 8, 32
    key = jax.random.PRNGKey(0)
    kx, k0, k1, k2, k3, k4, k5 = jax.random.split(key, 7)

    x = jax.random.normal(kx, (B, S, D), dtype=jnp.float32)

    # Deterministic parameter init (uniform, roughly like PyTorch Linear default).
    bound = 1.0 / (D ** 0.5)
    wk = jax.random.uniform(k0, (D, D), jnp.float32, -bound, bound)
    bk = jax.random.uniform(k1, (D,), jnp.float32, -bound, bound)
    wq = jax.random.uniform(k2, (D, D), jnp.float32, -bound, bound)
    bq = jax.random.uniform(k3, (D,), jnp.float32, -bound, bound)
    wv = jax.random.uniform(k4, (D, D), jnp.float32, -bound, bound)
    bv = jax.random.uniform(k5, (D,), jnp.float32, -bound, bound)

    out = kqv_self_attention(x, wk, bk, wq, bq, wv, bv)
    out = jax.block_until_ready(out)

    ref = _reference(x, wk, bk, wq, bq, wv, bv)
    assert out.shape == (B, S, D)
    # bf16 MXU operands with f32 accumulation → compare at bf16-level tolerance.
    assert jnp.allclose(out, ref, atol=5e-2, rtol=5e-2)

    print("KERNEL_OK")
</pallas_src>

<mosaic_0001>
module attributes {stable_mosaic.version = 11 : i64} {
  func.func @_kqv_attn_kernel(%arg0: i32, %arg1: i32, %arg2: memref<1x8x128xbf16, #tpu.memory_space<vmem>>, %arg3: memref<1x8x128xbf16, #tpu.memory_space<vmem>>, %arg4: memref<128x384xbf16, #tpu.memory_space<vmem>>, %arg5: memref<1x384xf32, #tpu.memory_space<vmem>>, %arg6: memref<1x8x128xf32, #tpu.memory_space<vmem>>, %arg7: memref<8x128xbf16, #tpu.memory_space<vmem>>, %arg8: memref<8x128xbf16, #tpu.memory_space<vmem>>) attributes {dimension_semantics = [#tpu.dimension_semantics<parallel>, #tpu.dimension_semantics<arbitrary>], iteration_bounds = array<i64: 2, 1>, scalar_prefetch = 0 : i64, scratch_operands = 2 : i64, tpu.core_type = #tpu.core_type<tc>, window_params = [{transform_indices = @transform_0, window_bounds = array<i64: 1, 8, 128>}, {transform_indices = @transform_1, window_bounds = array<i64: 1, 8, 128>}, {pipeline_mode = #tpu.pipeline_mode<synchronous>, transform_indices = @transform_2, window_bounds = array<i64: 128, 384>}, {pipeline_mode = #tpu.pipeline_mode<synchronous>, transform_indices = @transform_3, window_bounds = array<i64: 1, 384>}, {transform_indices = @transform_4, window_bounds = array<i64: 1, 8, 128>}]} {
    %c0_i32 = arith.constant 0 : i32
    %0 = arith.cmpi eq, %arg1, %c0_i32 : i32
    %1 = arith.extui %0 : i1 to i32
    %c0_i32_0 = arith.constant 0 : i32
    %2 = arith.cmpi ne, %1, %c0_i32_0 : i32
    scf.if %2 {
      %c0_17 = arith.constant 0 : index
      %c0_18 = arith.constant 0 : index
      %c0_19 = arith.constant 0 : index
      %29 = vector.load %arg3[%c0_17, %c0_18, %c0_19] : memref<1x8x128xbf16, #tpu.memory_space<vmem>>, vector<1x8x128xbf16>
      %30 = vector.shape_cast %29 : vector<1x8x128xbf16> to vector<8x128xbf16>
      %c0_20 = arith.constant 0 : index
      %c0_21 = arith.constant 0 : index
      %31 = vector.load %arg4[%c0_20, %c0_21] : memref<128x384xbf16, #tpu.memory_space<vmem>>, vector<128x256xbf16>
      %cst_22 = arith.constant dense<0.000000e+00> : vector<8x256xf32>
      %32 = tpu.matmul %30, %31, %cst_22 {dimension_numbers = #tpu.dot_dimension_numbers<[1], [0], [0], [1], [0, 0, 1, 1], [], []>} : vector<8x128xbf16>, vector<128x256xbf16>, vector<8x256xf32> -> vector<8x256xf32>
      %c0_23 = arith.constant 0 : index
      %c0_24 = arith.constant 0 : index
      %33 = vector.load %arg5[%c0_23, %c0_24] : memref<1x384xf32, #tpu.memory_space<vmem>>, vector<1x256xf32>
      %34 = vector.broadcast %33 : vector<1x256xf32> to vector<8x256xf32>
      %35 = arith.addf %32, %34 : vector<8x256xf32>
      %36 = vector.extract_strided_slice %35 {offsets = [0, 0], sizes = [8, 128], strides = [1, 1]} : vector<8x256xf32> to vector<8x128xf32>
      %37 = arith.truncf %36 : vector<8x128xf32> to vector<8x128xbf16>
      %c0_25 = arith.constant 0 : index
      %c0_26 = arith.constant 0 : index
      %38 = vector.load %arg7[%c0_25, %c0_26] : memref<8x128xbf16, #tpu.memory_space<vmem>>, vector<8x128xbf16>
      tpu.vector_store %arg7[%c0_25, %c0_26], %37 {strides = array<i32>} : memref<8x128xbf16, #tpu.memory_space<vmem>>, vector<8x128xbf16>,
      %39 = vector.extract_strided_slice %35 {offsets = [0, 128], sizes = [8, 128], strides = [1, 1]} : vector<8x256xf32> to vector<8x128xf32>
      %40 = arith.truncf %39 : vector<8x128xf32> to vector<8x128xbf16>
      %c0_27 = arith.constant 0 : index
      %c0_28 = arith.constant 0 : index
      %41 = vector.load %arg8[%c0_27, %c0_28] : memref<8x128xbf16, #tpu.memory_space<vmem>>, vector<8x128xbf16>
      tpu.vector_store %arg8[%c0_27, %c0_28], %40 {strides = array<i32>} : memref<8x128xbf16, #tpu.memory_space<vmem>>, vector<8x128xbf16>,
    } else {
    }
    %c0 = arith.constant 0 : index
    %c0_1 = arith.constant 0 : index
    %c0_2 = arith.constant 0 : index
    %3 = vector.load %arg2[%c0, %c0_1, %c0_2] : memref<1x8x128xbf16, #tpu.memory_space<vmem>>, vector<1x8x128xbf16>
    %4 = vector.shape_cast %3 : vector<1x8x128xbf16> to vector<8x128xbf16>
    %c0_3 = arith.constant 0 : index
    %c256 = arith.constant 256 : index
    %5 = vector.load %arg4[%c0_3, %c256] : memref<128x384xbf16, #tpu.memory_space<vmem>>, vector<128x128xbf16>
    %cst = arith.constant dense<0.000000e+00> : vector<8x128xf32>
    %6 = tpu.matmul %4, %5, %cst {dimension_numbers = #tpu.dot_dimension_numbers<[1], [0], [0], [1], [0, 0, 1, 1], [], []>} : vector<8x128xbf16>, vector<128x128xbf16>, vector<8x128xf32> -> vector<8x128xf32>
    %c0_4 = arith.constant 0 : index
    %c256_5 = arith.constant 256 : index
    %7 = vector.load %arg5[%c0_4, %c256_5] : memref<1x384xf32, #tpu.memory_space<vmem>>, vector<1x128xf32>
    %8 = vector.broadcast %7 : vector<1x128xf32> to vector<8x128xf32>
    %9 = arith.addf %6, %8 : vector<8x128xf32>
    %10 = arith.truncf %9 : vector<8x128xf32> to vector<8x128xbf16>
    %c0_6 = arith.constant 0 : index
    %c0_7 = arith.constant 0 : index
    %11 = vector.load %arg7[%c0_6, %c0_7] : memref<8x128xbf16, #tpu.memory_space<vmem>>, vector<8x128xbf16>
    %cst_8 = arith.constant dense<0.000000e+00> : vector<8x8xf32>
    %12 = tpu.matmul %10, %11, %cst_8 {dimension_numbers = #tpu.dot_dimension_numbers<[1], [1], [0], [0], [0, 0, 1, 0], [], []>} : vector<8x128xbf16>, vector<8x128xbf16>, vector<8x8xf32> -> vector<8x8xf32>
    %cst_9 = arith.constant dense<0xFF800000> : vector<8xf32>
    %13 = vector.multi_reduction <maximumf>, %12, %cst_9 [1] : vector<8x8xf32> to vector<8xf32>
    %14 = vector.shape_cast %13 : vector<8xf32> to vector<8x1xf32>
    %15 = vector.broadcast %14 : vector<8x1xf32> to vector<8x8xf32>
    %16 = arith.subf %12, %15 : vector<8x8xf32>
    %17 = math.exp %16 : vector<8x8xf32>
    %cst_10 = arith.constant dense<0.000000e+00> : vector<8xf32>
    %18 = vector.multi_reduction <add>, %17, %cst_10 [1] : vector<8x8xf32> to vector<8xf32>
    %19 = vector.shape_cast %18 : vector<8xf32> to vector<8x1xf32>
    %20 = arith.truncf %17 : vector<8x8xf32> to vector<8x8xbf16>
    %c0_11 = arith.constant 0 : index
    %c0_12 = arith.constant 0 : index
    %21 = vector.load %arg8[%c0_11, %c0_12] : memref<8x128xbf16, #tpu.memory_space<vmem>>, vector<8x128xbf16>
    %cst_13 = arith.constant dense<0.000000e+00> : vector<8x128xf32>
    %22 = tpu.matmul %20, %21, %cst_13 {dimension_numbers = #tpu.dot_dimension_numbers<[1], [0], [0], [1], [0, 0, 1, 1], [], []>} : vector<8x8xbf16>, vector<8x128xbf16>, vector<8x128xf32> -> vector<8x128xf32>
    %23 = tpu.reciprocal %19 {approx = true} : vector<8x1xf32> -> vector<8x1xf32>
    %24 = vector.broadcast %23 : vector<8x1xf32> to vector<8x128xf32>
    %25 = arith.mulf %22, %24 : vector<8x128xf32>
    %c0_14 = arith.constant 0 : index
    %c0_15 = arith.constant 0 : index
    %c0_16 = arith.constant 0 : index
    %26 = vector.load %arg6[%c0_14, %c0_15, %c0_16] : memref<1x8x128xf32, #tpu.memory_space<vmem>>, vector<1x8x128xf32>
    %27 = vector.shape_cast %26 : vector<1x8x128xf32> to vector<8x128xf32>
    %28 = vector.shape_cast %25 : vector<8x128xf32> to vector<1x8x128xf32>
    tpu.vector_store %arg6[%c0_14, %c0_15, %c0_16], %28 {strides = array<i32>} : memref<1x8x128xf32, #tpu.memory_space<vmem>>, vector<1x8x128xf32>,
    return
  }
  func.func @transform_0(%arg0: i32, %arg1: i32) -> (i32, i32, i32) {
    %c0_i32 = arith.constant 0 : i32
    %c0_i32_0 = arith.constant 0 : i32
    return %arg0, %arg1, %c0_i32 : i32, i32, i32
  }
  func.func @transform_1(%arg0: i32, %arg1: i32) -> (i32, i32, i32) {
    %c0_i32 = arith.constant 0 : i32
    %c0_i32_0 = arith.constant 0 : i32
    %c0_i32_1 = arith.constant 0 : i32
    return %arg0, %c0_i32, %c0_i32_0 : i32, i32, i32
  }
  func.func @transform_2(%arg0: i32, %arg1: i32) -> (i32, i32) {
    %c0_i32 = arith.constant 0 : i32
    %c0_i32_0 = arith.constant 0 : i32
    %c0_i32_1 = arith.constant 0 : i32
    return %c0_i32, %c0_i32_0 : i32, i32
  }
  func.func @transform_3(%arg0: i32, %arg1: i32) -> (i32, i32) {
    %c0_i32 = arith.constant 0 : i32
    %c0_i32_0 = arith.constant 0 : i32
    %c0_i32_1 = arith.constant 0 : i32
    return %c0_i32, %c0_i32_0 : i32, i32
  }
  func.func @transform_4(%arg0: i32, %arg1: i32) -> (i32, i32, i32) {
    %c0_i32 = arith.constant 0 : i32
    %c0_i32_0 = arith.constant 0 : i32
    return %arg0, %arg1, %c0_i32 : i32, i32, i32
  }
}

</mosaic_0001>

<llo_original>
// kernel: tpu_custom_call.1
$region0: #{tpu_custom_call.1}
  #allocation0 [shape = 'u32[]', space=smem, size = 0x4, offset = 0x4, fixed_abs, tag = 'smem constant byte address 0x4 - core index']
  #allocation1 [shape = 'u32[144,128]{1,0:T(1,128)}', space=vmem, size = 0x12000, scoped, tag = 'internal scratch']
  #allocation2 [shape = 'bf16[8,128]{1,0:T(8,128)(2,1)}', space=vmem, size = 0x800, scoped, tag = 'scratch operand']
  #allocation3 [shape = 'bf16[8,128]{1,0:T(8,128)(2,1)}', space=vmem, size = 0x800, scoped, tag = 'scratch operand']
  %s0 = inlined_call_operand.hbm [shape: bf16[2,8,128], index: 0, kind: input, shape index: {}]
  %s1 = inlined_call_operand.hbm [shape: bf16[2,8,128], index: 1, kind: input, shape index: {}]
  %s2 = inlined_call_operand.hbm [shape: bf16[128,384], index: 2, kind: input, shape index: {}]
  %s3 = inlined_call_operand.vmem [shape: f32[1,384], index: 3, kind: input, shape index: {}]
  %s4 = inlined_call_operand.hbm [shape: f32[2,8,128], index: 4, kind: output, shape index: {}]
  %s5 = sld [smem:[#allocation0]]
  $region65: #{tpu_custom_call.1} parent=0
    _
  %s7 = ssub.s32 1, %s5
  %s8 = scalar_select 0, %s7, %s5
  $region1: #{tpu_custom_call.1} parent=0
    #allocation4 [shape = 'u8[4096]{0}', space=vmem, size = 0x1000, scoped, tag = 'input window, operand 0']
    #allocation5 [shape = 's32[2]{0}', space=sflag, size = 0x8, scoped, tag = 'scoped memory for tpu_custom_call.1']
    #allocation6 [shape = 's32[2]{0}', space=sflag, size = 0x8, scoped, tag = 'scoped memory for tpu_custom_call.1']
    #allocation7 [shape = 'u8[4096]{0}', space=vmem, size = 0x1000, scoped, tag = 'input window, operand 1']
    #allocation8 [shape = 's32[2]{0}', space=sflag, size = 0x8, scoped, tag = 'scoped memory for tpu_custom_call.1']
    #allocation9 [shape = 'u8[98304]{0}', space=vmem, size = 0x18000, scoped, tag = 'input window, operand 2, single buffered']
    #allocation10 [shape = 'u8[8192]{0}', space=vmem, size = 0x2000, scoped, tag = 'output window, operand 0']
    %9 = vsyncpa [#allocation5], 0
    %s10 = scalar_lea.sflag [#allocation5], 1
    %11 = vsyncpa %s10, 0
    %12 = vsyncpa [#allocation8], 0
    %s13 = scalar_lea.sflag [#allocation8], 1
    %14 = vsyncpa %s13, 0
    %15 = vsyncpa [#allocation6], 0
    %s16 = scalar_lea.sflag [#allocation6], 1
    %17 = vsyncpa %s16, 0
    loop: start=0, step=1, limit=4
    $region2: #{tpu_custom_call.1} parent=1 // loop_pre_header
      _
    $region3: #{tpu_custom_call.1} parent=1 // loop_header
      %s19 = sphi 0, %s23
      %p20 = scmp.ge.s32.totalorder %s19, 4
      %s26 = sphi 0, %s38
      %s27 = sphi 0, %s34
      %s28 = sphi 0, %s26
      %s29 = sphi 0, %s27
      %s30 = sphi 0, %s28
      %s31 = sphi 0, %s29
      %s43 = sphi 0, %s45
      %s46 = sphi 0, %s43
      %s47 = sphi 0, %s46
      %s63 = sphi 0, %s47
      %s69 = sphi 0, %s71
      %s72 = sphi 0, %s69
      %s73 = sphi 0, %s72
      %s89 = sphi 0, %s73
      %s93 = sphi 0, %s93
      %s95 = sphi 0, %s93
      %s96 = sphi 0, %s95
      %s110 = sphi 0, %s96
      %s114 = sphi 0, %s114
      %s116 = sphi 0, %s114
      %s117 = sphi 0, %s116
      %s131 = sphi 0, %s117
      %s139 = sphi 0, %s141
      %s142 = sphi 0, %s139
      %s143 = sphi 0, %s142
      %s159 = sphi 0, %s143
    $region4: #{tpu_custom_call.1} parent=1 // loop_header_branch
      %22 = sbr.rel (%p20) target = $region8
    $region5: #{tpu_custom_call.1} parent=1 // loop_body
      %s24 = ssub.s32 %s19, 1
      %s25 = ssub.s32 %s19, 2
      %s32 = sadd.s32 1, %s27
      %p33 = scmp.ge.s32.totalorder %s32, 1
      %s34 = scalar_select %p33, 0, %s32
      %s35 = sadd.s32 1, %s26
      %s36 = scalar_select %p33, %s35, %s26
      %p37 = scmp.ge.s32.totalorder %s36, 2
      %s38 = scalar_select %p37, 0, %s36
      %s39 = ssub.s32 %s26, %s38
      %s40 = ssub.s32 %s27, %s34
      %s41 = sor.u32 %s39, %s40
      %p42 = scmp.eq.s32.totalorder %s41, 0
      %s44 = sadd.s32 %s43, 1
      %s45 = scalar_select %p42, %s43, %s44
      %p48 = pneg %p42
      %p49 = scmp.eq.s32.totalorder %s19, 1
      %p50 = por %p48, %p49
      %p51 = scmp.ne.s32.totalorder %s43, %s46
      %p52 = scmp.eq.s32.totalorder %s19, 0
      %p53 = por %p51, %p52
      %p54 = scmp.ne.s32.totalorder %s43, %s46
      %p55 = scmp.eq.s32.totalorder %s24, 1
      %p56 = por %p54, %p55
      %p57 = scmp.ne.s32.totalorder %s46, %s47
      %p58 = scmp.eq.s32.totalorder %s24, 0
      %p59 = por %p57, %p58
      %p60 = scmp.ne.s32.totalorder %s46, %s47
      %p61 = scmp.eq.s32.totalorder %s25, 1
      %p62 = por %p60, %p61
      %p64 = scmp.ne.s32.totalorder %s47, %s63
      %p65 = scmp.eq.s32.totalorder %s25, 0
      %p66 = por %p64, %p65
      %s67 = ssub.s32 %s26, %s38
      %p68 = scmp.eq.s32.totalorder %s67, 0
      %s70 = sadd.s32 %s69, 1
      %s71 = scalar_select %p68, %s69, %s70
      %p74 = pneg %p68
      %p75 = scmp.eq.s32.totalorder %s19, 1
      %p76 = por %p74, %p75
      %p77 = scmp.ne.s32.totalorder %s69, %s72
      %p78 = scmp.eq.s32.totalorder %s19, 0
      %p79 = por %p77, %p78
      %p80 = scmp.ne.s32.totalorder %s69, %s72
      %p81 = scmp.eq.s32.totalorder %s24, 1
      %p82 = por %p80, %p81
      %p83 = scmp.ne.s32.totalorder %s72, %s73
      %p84 = scmp.eq.s32.totalorder %s24, 0
      %p85 = por %p83, %p84
      %p86 = scmp.ne.s32.totalorder %s72, %s73
      %p87 = scmp.eq.s32.totalorder %s25, 1
      %p88 = por %p86, %p87
      %p90 = scmp.ne.s32.totalorder %s73, %s89
      %p91 = scmp.eq.s32.totalorder %s25, 0
      %p92 = por %p90, %p91
      %s94 = sadd.s32 %s93, 1
      %p97 = scmp.eq.s32.totalorder %s19, 1
      %p98 = scmp.ne.s32.totalorder %s93, %s95
      %p99 = scmp.eq.s32.totalorder %s19, 0
      %p100 = por %p98, %p99
      %p101 = scmp.ne.s32.totalorder %s93, %s95
      %p102 = scmp.eq.s32.totalorder %s24, 1
      %p103 = por %p101, %p102
      %p104 = scmp.ne.s32.totalorder %s95, %s96
      %p105 = scmp.eq.s32.totalorder %s24, 0
      %p106 = por %p104, %p105
      %p107 = scmp.ne.s32.totalorder %s95, %s96
      %p108 = scmp.eq.s32.totalorder %s25, 1
      %p109 = por %p107, %p108
      %p111 = scmp.ne.s32.totalorder %s96, %s110
      %p112 = scmp.eq.s32.totalorder %s25, 0
      %p113 = por %p111, %p112
      %s115 = sadd.s32 %s114, 1
      %p118 = scmp.eq.s32.totalorder %s19, 1
      %p119 = scmp.ne.s32.totalorder %s114, %s116
      %p120 = scmp.eq.s32.totalorder %s19, 0
      %p121 = por %p119, %p120
      %p122 = scmp.ne.s32.totalorder %s114, %s116
      %p123 = scmp.eq.s32.totalorder %s24, 1
      %p124 = por %p122, %p123
      %p125 = scmp.ne.s32.totalorder %s116, %s117
      %p126 = scmp.eq.s32.totalorder %s24, 0
      %p127 = por %p125, %p126
      %p128 = scmp.ne.s32.totalorder %s116, %s117
      %p129 = scmp.eq.s32.totalorder %s25, 1
      %p130 = por %p128, %p129
      %p132 = scmp.ne.s32.totalorder %s117, %s131
      %p133 = scmp.eq.s32.totalorder %s25, 0
      %p134 = por %p132, %p133
      %s135 = ssub.s32 %s26, %s38
      %s136 = ssub.s32 %s27, %s34
      %s137 = sor.u32 %s135, %s136
      %p138 = scmp.eq.s32.totalorder %s137, 0
      %s140 = sadd.s32 %s139, 1
      %s141 = scalar_select %p138, %s139, %s140
      %p144 = pneg %p138
      %p145 = scmp.eq.s32.totalorder %s19, 1
      %p146 = por %p144, %p145
      %p147 = scmp.ne.s32.totalorder %s139, %s142
      %p148 = scmp.eq.s32.totalorder %s19, 0
      %p149 = por %p147, %p148
      %p150 = scmp.ne.s32.totalorder %s139, %s142
      %p151 = scmp.eq.s32.totalorder %s24, 1
      %p152 = por %p150, %p151
      %p153 = scmp.ne.s32.totalorder %s142, %s143
      %p154 = scmp.eq.s32.totalorder %s24, 0
      %p155 = por %p153, %p154
      %p156 = scmp.ne.s32.totalorder %s142, %s143
      %p157 = scmp.eq.s32.totalorder %s25, 1
      %p158 = por %p156, %p157
      %p160 = scmp.ne.s32.totalorder %s143, %s159
      %p161 = scmp.eq.s32.totalorder %s25, 0
      %p162 = por %p160, %p161
      %p163 = scmp.le.s32.totalorder 1, %s19
      %p164 = scmp.lt.s32.totalorder %s19, 3
      %p165 = pnand %p163, %p164
      %p166 = pneg %p165
      // Predicated region
      $region9: #{tpu_custom_call.1} parent=5 // pred_check
        _
      $region10: #{tpu_custom_call.1} parent=5 // pred_check_branch
        %168 = sbr.rel (%p165) target = $region12
      $region11: #{tpu_custom_call.1} parent=5 // pred_region
        %s169 = ssub.s32 %s19, 1
        // Predicated region
        $region13: #{tpu_custom_call.1} parent=11 // pred_check
          %p170 = pneg %p106
        $region14: #{tpu_custom_call.1} parent=11 // pred_check_branch
          %172 = sbr.rel (%p170) target = $region16
        $region15: #{tpu_custom_call.1} parent=11 // pred_region
          %s174 = ssub.s32 3072, 3072
          %175 = vsyncadd [#allocation8], %s174
          %s176 = sshll.u32 [#allocation9], 4
          %s177 = int_to_ptr.vmem [resolvable:$true] %s176
          %182 = dma.hbm_to_vmem [thread:$0]  %s2, 3072, %s177, [#allocation8], 192, 192, 12
        $region16: #{tpu_custom_call.1} parent=11 // pred_fallthru
          _
        // Predicated region
        $region17: #{tpu_custom_call.1} parent=11 // pred_check
          %p183 = pneg %p127
        $region18: #{tpu_custom_call.1} parent=11 // pred_check_branch
          %185 = sbr.rel (%p183) target = $region20
        $region19: #{tpu_custom_call.1} parent=11 // pred_region
          _
        $region20: #{tpu_custom_call.1} parent=11 // pred_fallthru
          _
      $region12: #{tpu_custom_call.1} parent=5 // pred_fallthru
        _
      %p186 = scmp.lt.s32.totalorder %s19, 2
      // Predicated region
      $region21: #{tpu_custom_call.1} parent=5 // pred_check
        %p187 = pneg %p186
      $region22: #{tpu_custom_call.1} parent=5 // pred_check_branch
        %189 = sbr.rel (%p187) target = $region24
      $region23: #{tpu_custom_call.1} parent=5 // pred_region
        // Predicated region
        $region25: #{tpu_custom_call.1} parent=23 // pred_check
          %p190 = pneg %p53
        $region26: #{tpu_custom_call.1} parent=23 // pred_check_branch
          %192 = sbr.rel (%p190) target = $region28
        $region27: #{tpu_custom_call.1} parent=23 // pred_region
          %s193 = sand.u32 %s43, 1
          %s194 = scalar_lea.sflag [#allocation5], %s193
          %s195 = sand.u32 %s43, 1
          %s196 = smul.addr %s195, 4
          %s197 = scalar_lea.vmem [#allocation4], %s196
          %s199 = ssub.s32 64, 64
          %200 = vsyncadd %s194, %s199
          %s201 = sadd.s32 %s27, %s26
          %s202 = smul.addr %s201, 64
          %s203 = scalar_lea.hbm %s0, %s202
          %s205 = sshll.u32 %s197, 4
          %s206 = int_to_ptr.vmem [resolvable:$true] %s205
          %208 = dma.hbm_to_vmem [thread:$0]  %s203, 64, %s206, %s194
        $region28: #{tpu_custom_call.1} parent=23 // pred_fallthru
          _
        // Predicated region
        $region29: #{tpu_custom_call.1} parent=23 // pred_check
          %p209 = pneg %p79
        $region30: #{tpu_custom_call.1} parent=23 // pred_check_branch
          %211 = sbr.rel (%p209) target = $region32
        $region31: #{tpu_custom_call.1} parent=23 // pred_region
          %s212 = sand.u32 %s19, 1
          %s213 = scalar_lea.sflag [#allocation8], %s212
          %s214 = sand.u32 %s69, 1
          %s215 = smul.addr %s214, 4
          %s216 = scalar_lea.vmem [#allocation7], %s215
          %s218 = ssub.s32 64, 64
          %219 = vsyncadd %s213, %s218
          %s220 = smul.addr %s26, 64
          %s221 = scalar_lea.hbm %s1, %s220
          %s223 = sshll.u32 %s216, 4
          %s224 = int_to_ptr.vmem [resolvable:$true] %s223
          %226 = dma.hbm_to_vmem [thread:$0]  %s221, 64, %s224, %s213
        $region32: #{tpu_custom_call.1} parent=23 // pred_fallthru
          _
      $region24: #{tpu_custom_call.1} parent=5 // pred_fallthru
        _
      %p227 = scmp.le.s32.totalorder 1, %s19
      %p228 = scmp.lt.s32.totalorder %s19, 3
      %p229 = pnand %p227, %p228
      %p230 = pneg %p229
      // Predicated region
      $region33: #{tpu_custom_call.1} parent=5 // pred_check
        _
      $region34: #{tpu_custom_call.1} parent=5 // pred_check_branch
        %232 = sbr.rel (%p229) target = $region36
      $region35: #{tpu_custom_call.1} parent=5 // pred_region
        %s233 = ssub.s32 %s19, 1
        %s234 = sand.u32 %s46, 1
        %s235 = scalar_lea.sflag [#allocation5], %s234
        %s236 = sand.u32 %s46, 1
        %s237 = smul.addr %s236, 4
        %s238 = scalar_lea.vmem [#allocation4], %s237
        // Predicated region
        $region37: #{tpu_custom_call.1} parent=35 // pred_check
          %p239 = pneg %p59
        $region38: #{tpu_custom_call.1} parent=35 // pred_check_branch
          %241 = sbr.rel (%p239) target = $region40
        $region39: #{tpu_custom_call.1} parent=35 // pred_region
          %242 = dma.done %s235, 64
        $region40: #{tpu_custom_call.1} parent=35 // pred_fallthru
          _
        %s243 = sand.u32 %s24, 1
        %s244 = scalar_lea.sflag [#allocation8], %s243
        %s245 = sand.u32 %s72, 1
        %s246 = smul.addr %s245, 4
        %s247 = scalar_lea.vmem [#allocation7], %s246
        // Predicated region
        $region41: #{tpu_custom_call.1} parent=35 // pred_check
          %p248 = pneg %p85
        $region42: #{tpu_custom_call.1} parent=35 // pred_check_branch
          %250 = sbr.rel (%p248) target = $region44
        $region43: #{tpu_custom_call.1} parent=35 // pred_region
          %251 = dma.done %s244, 64
        $region44: #{tpu_custom_call.1} parent=35 // pred_fallthru
          _
        // Predicated region
        $region45: #{tpu_custom_call.1} parent=35 // pred_check
          %p252 = pneg %p106
        $region46: #{tpu_custom_call.1} parent=35 // pred_check_branch
          %254 = sbr.rel (%p252) target = $region48
        $region47: #{tpu_custom_call.1} parent=35 // pred_region
          %255 = dma.done [#allocation8], 3072
        $region48: #{tpu_custom_call.1} parent=35 // pred_fallthru
          _
        %s256 = sand.u32 %s46, 1
        %s257 = scalar_lea.sflag [#allocation5], %s256
        %s258 = sand.u32 %s46, 1
        %s259 = smul.addr %s258, 4
        %s260 = scalar_lea.vmem [#allocation4], %s259
        %p261 = pneg %p59
        %p262 = pneg %p56
        %s263 = sand.u32 %s24, 1
        %s264 = scalar_lea.sflag [#allocation8], %s263
        %s265 = sand.u32 %s72, 1
        %s266 = smul.addr %s265, 4
        %s267 = scalar_lea.vmem [#allocation7], %s266
        %p268 = pneg %p85
        %p269 = pneg %p82
        %p270 = pneg %p106
        %p271 = pneg %p103
        %p272 = pneg %p127
        %p273 = pneg %p124
        %p274 = pneg %p155
        %p275 = pneg %p152
        %s276 = sand.u32 %s142, 1
        %s277 = scalar_lea.sflag [#allocation6], %s276
        %s278 = sand.u32 %s142, 1
        %s279 = smul.addr %s278, 8
        %s280 = scalar_lea.vmem [#allocation10], %s279
        %p282 = scmp.eq.s32.totalorder %s29, 0
        // Predicated region
        $region49: #{tpu_custom_call.1} parent=35 // pred_check
          %p283 = pneg %p282
        $region50: #{tpu_custom_call.1} parent=35 // pred_check_branch
          %285 = sbr.rel (%p283) target = $region52
        $region51: #{tpu_custom_call.1} parent=35 // pred_region
          %v286 = vld [vmem:[%s247] sm:$0xf]
          %v287 = vld [vmem:[#allocation9] sm:$0xff]
          %v288 = vld [vmem:[#allocation9 + $0xc] sm:$0xff]
          %v289 = vld [vmem:[#allocation9 + $0x18] sm:$0xff]
          %v290 = vld [vmem:[#allocation9 + $0x24] sm:$0xff]
          %v291 = vld [vmem:[#allocation9 + $0x30] sm:$0xff]
          %v292 = vld [vmem:[#allocation9 + $0x3c] sm:$0xff]
          %v293 = vld [vmem:[#allocation9 + $0x48] sm:$0xff]
          %v294 = vld [vmem:[#allocation9 + $0x54] sm:$0xff]
          %v295 = vld [vmem:[#allocation9 + $0x60] sm:$0xff]
          %v296 = vld [vmem:[#allocation9 + $0x6c] sm:$0xff]
          %v297 = vld [vmem:[#allocation9 + $0x78] sm:$0xff]
          %v298 = vld [vmem:[#allocation9 + $0x84] sm:$0xff]
          %v299 = vld [vmem:[#allocation9 + $0x90] sm:$0xff]
          %v300 = vld [vmem:[#allocation9 + $0x9c] sm:$0xff]
          %v301 = vld [vmem:[#allocation9 + $0xa8] sm:$0xff]
          %v302 = vld [vmem:[#allocation9 + $0xb4] sm:$0xff]
          %v303 = vld [vmem:[%s3] sm:$0x3]
          %v305 = vlaneseq
          %v306 = vshrl.u32 %v305, 7
          %v307 = vsub.s32 0, %v306
          %v308 = vrot.slane %v303, %v307
          %v309 = vlaneseq
          %v310 = vshrl.u32 %v309, 7
          %v311 = vsub.s32 1, %v310
          %v312 = vrot.slane %v303, %v311
          %v331 = vunpack.c.l.b16 %v287
          %v332 = vunpack.c.h.b16 %v287
          %v333 = vunpack.c.l.b16 %v288
          %v334 = vunpack.c.h.b16 %v288
          %v335 = vunpack.c.l.b16 %v289
          %v336 = vunpack.c.h.b16 %v289
          %v337 = vunpack.c.l.b16 %v290
          %v338 = vunpack.c.h.b16 %v290
          %v339 = vunpack.c.l.b16 %v291
          %v340 = vunpack.c.h.b16 %v291
          %v341 = vunpack.c.l.b16 %v292
          %v342 = vunpack.c.h.b16 %v292
          %v343 = vunpack.c.l.b16 %v293
          %v344 = vunpack.c.h.b16 %v293
          %v345 = vunpack.c.l.b16 %v294
          %v346 = vunpack.c.h.b16 %v294
          %v347 = vunpack.c.l.b16 %v295
          %v348 = vunpack.c.h.b16 %v295
          %v349 = vunpack.c.l.b16 %v296
          %v350 = vunpack.c.h.b16 %v296
          %v351 = vunpack.c.l.b16 %v297
          %v352 = vunpack.c.h.b16 %v297
          %v353 = vunpack.c.l.b16 %v298
          %v354 = vunpack.c.h.b16 %v298
          %v355 = vunpack.c.l.b16 %v299
          %v356 = vunpack.c.h.b16 %v299
          %v357 = vunpack.c.l.b16 %v300
          %v358 = vunpack.c.h.b16 %v300
          %v359 = vunpack.c.l.b16 %v301
          %v360 = vunpack.c.h.b16 %v301
          %v361 = vunpack.c.l.b16 %v302
          %v362 = vunpack.c.h.b16 %v302
          %v363 = vpack.c.b16 %v333, %v331
          %v364 = vpack.c.b16 %v334, %v332
          %v365 = vpack.c.b16 %v337, %v335
          %v366 = vpack.c.b16 %v338, %v336
          %v367 = vpack.c.b16 %v341, %v339
          %v368 = vpack.c.b16 %v342, %v340
          %v369 = vpack.c.b16 %v345, %v343
          %v370 = vpack.c.b16 %v346, %v344
          %v371 = vpack.c.b16 %v349, %v347
          %v372 = vpack.c.b16 %v350, %v348
          %v373 = vpack.c.b16 %v353, %v351
          %v374 = vpack.c.b16 %v354, %v352
          %v375 = vpack.c.b16 %v357, %v355
          %v376 = vpack.c.b16 %v358, %v356
          %v377 = vpack.c.b16 %v361, %v359
          %v378 = vpack.c.b16 %v362, %v360
          %395 = vmatprep.subr.bf16.mxu0 %v378
          %396 = vmatpush1.bf16.msra.mxu0 %v377
          %397 = vmatprep.subr.bf16.mxu0 %v376
          %398 = vmatpush1.bf16.msra.mxu0 %v375
          %399 = vmatprep.subr.bf16.mxu0 %v374
          %400 = vmatpush1.bf16.msra.mxu0 %v373
          %401 = vmatprep.subr.bf16.mxu0 %v372
          %402 = vmatpush1.bf16.msra.mxu0 %v371
          %403 = vmatprep.subr.bf16.mxu0 %v370
          %404 = vmatpush1.bf16.msra.mxu0 %v369
          %405 = vmatprep.subr.bf16.mxu0 %v368
          %406 = vmatpush1.bf16.msra.mxu0 %v367
          %407 = vmatprep.subr.bf16.mxu0 %v366
          %408 = vmatpush1.bf16.msra.mxu0 %v365
          %409 = vmatprep.subr.bf16.mxu0 %v364
          %410 = vmatpush1.bf16.msra.mxu0 %v363
          %411 = vmatprep.subr.bf16.mxu0 0
          %412 = vmatpush2.bf16.msra.mxu0 0
          %413 = vmatprep.subr.bf16.mxu0 0
          %414 = vmatpush2.bf16.msra.mxu0 0
          %415 = vmatprep.subr.bf16.mxu0 0
          %416 = vmatpush2.bf16.msra.mxu0 0
          %417 = vmatprep.subr.bf16.mxu0 0
          %418 = vmatpush2.bf16.msra.mxu0 0
          %419 = vmatprep.subr.bf16.mxu0 0
          %420 = vmatpush2.bf16.msra.mxu0 0
          %421 = vmatprep.subr.bf16.mxu0 0
          %422 = vmatpush2.bf16.msra.mxu0 0
          %423 = vmatprep.subr.bf16.mxu0 0
          %424 = vmatpush2.bf16.msra.mxu0 0
          %425 = vmatprep.subr.bf16.mxu0 0
          %426 = vmatpush2.bf16.msra.mxu0 0
          %427 = vmatprep.mubr.bf16.mxu0 0
          %428 = vmatmul.mubr.bf16.gmra.mxu0 %v286
          %v429 = vpop.f32.mrf.mxu0
          %v430 = vadd.f32 %v308, %v429
          %v431 = vpop.f32.mrf.mxu0
          %v432 = vadd.f32 %v312, %v431
          %v433 = vpop.f32.mrf.mxu0
          %v434 = vpop.f32.mrf.mxu0
          %435 = vdwg.mxu0
          %v436 = vpack.c.bf16 %v430, %v430
          %437 = vst [vmem:[#allocation2] sm:$0xf] %v436
          %v438 = vpack.c.bf16 %v432, %v432
          %439 = vst [vmem:[#allocation3] sm:$0xf] %v438
        $region52: #{tpu_custom_call.1} parent=35 // pred_fallthru
          _
        %v440 = vld [vmem:[%s238] sm:$0xf]
        %v441 = vld [vmem:[#allocation9 + $0x8] sm:$0xf]
        %v442 = vld [vmem:[#allocation9 + $0x14] sm:$0xf]
        %v443 = vld [vmem:[#allocation9 + $0x20] sm:$0xf]
        %v444 = vld [vmem:[#allocation9 + $0x2c] sm:$0xf]
        %v445 = vld [vmem:[#allocation9 + $0x38] sm:$0xf]
        %v446 = vld [vmem:[#allocation9 + $0x44] sm:$0xf]
        %v447 = vld [vmem:[#allocation9 + $0x50] sm:$0xf]
        %v448 = vld [vmem:[#allocation9 + $0x5c] sm:$0xf]
        %v449 = vld [vmem:[#allocation9 + $0x68] sm:$0xf]
        %v450 = vld [vmem:[#allocation9 + $0x74] sm:$0xf]
        %v451 = vld [vmem:[#allocation9 + $0x80] sm:$0xf]
        %v452 = vld [vmem:[#allocation9 + $0x8c] sm:$0xf]
        %v453 = vld [vmem:[#allocation9 + $0x98] sm:$0xf]
        %v454 = vld [vmem:[#allocation9 + $0xa4] sm:$0xf]
        %v455 = vld [vmem:[#allocation9 + $0xb0] sm:$0xf]
        %v456 = vld [vmem:[#allocation9 + $0xbc] sm:$0xf]
        %v457 = vld [vmem:[%s3 + $0x2] sm:$0x1]
        %v459 = vlaneseq
        %v460 = vshrl.u32 %v459, 7
        %v461 = vsub.s32 0, %v460
        %v462 = vrot.slane %v457, %v461
        %v480 = vunpack.c.l.b16 %v441
        %v481 = vunpack.c.l.b16 %v442
        %v482 = vunpack.c.l.b16 %v443
        %v483 = vunpack.c.l.b16 %v444
        %v484 = vunpack.c.l.b16 %v445
        %v485 = vunpack.c.l.b16 %v446
        %v486 = vunpack.c.l.b16 %v447
        %v487 = vunpack.c.l.b16 %v448
        %v488 = vunpack.c.l.b16 %v449
        %v489 = vunpack.c.l.b16 %v450
        %v490 = vunpack.c.l.b16 %v451
        %v491 = vunpack.c.l.b16 %v452
        %v492 = vunpack.c.l.b16 %v453
        %v493 = vunpack.c.l.b16 %v454
        %v494 = vunpack.c.l.b16 %v455
        %v495 = vunpack.c.l.b16 %v456
        %v496 = vpack.c.b16 %v481, %v480
        %v497 = vpack.c.b16 %v483, %v482
        %v498 = vpack.c.b16 %v485, %v484
        %v499 = vpack.c.b16 %v487, %v486
        %v500 = vpack.c.b16 %v489, %v488
        %v501 = vpack.c.b16 %v491, %v490
        %v502 = vpack.c.b16 %v493, %v492
        %v503 = vpack.c.b16 %v495, %v494
        %512 = vmatprep.subr.bf16.mxu0 0
        %513 = vmatpush1.bf16.msra.mxu0 %v503
        %514 = vmatprep.subr.bf16.mxu0 0
        %515 = vmatpush1.bf16.msra.mxu0 %v502
        %516 = vmatprep.subr.bf16.mxu0 0
        %517 = vmatpush1.bf16.msra.mxu0 %v501
        %518 = vmatprep.subr.bf16.mxu0 0
        %519 = vmatpush1.bf16.msra.mxu0 %v500
        %520 = vmatprep.subr.bf16.mxu0 0
        %521 = vmatpush1.bf16.msra.mxu0 %v499
        %522 = vmatprep.subr.bf16.mxu0 0
        %523 = vmatpush1.bf16.msra.mxu0 %v498
        %524 = vmatprep.subr.bf16.mxu0 0
        %525 = vmatpush1.bf16.msra.mxu0 %v497
        %526 = vmatprep.subr.bf16.mxu0 0
        %527 = vmatpush1.bf16.msra.mxu0 %v496
        %528 = vmatprep.subr.bf16.mxu0 0
        %529 = vmatpush2.bf16.msra.mxu0 0
        %530 = vmatprep.subr.bf16.mxu0 0
        %531 = vmatpush2.bf16.msra.mxu0 0
        %532 = vmatprep.subr.bf16.mxu0 0
        %533 = vmatpush2.bf16.msra.mxu0 0
        %534 = vmatprep.subr.bf16.mxu0 0
        %535 = vmatpush2.bf16.msra.mxu0 0
        %536 = vmatprep.subr.bf16.mxu0 0
        %537 = vmatpush2.bf16.msra.mxu0 0
        %538 = vmatprep.subr.bf16.mxu0 0
        %539 = vmatpush2.bf16.msra.mxu0 0
        %540 = vmatprep.subr.bf16.mxu0 0
        %541 = vmatpush2.bf16.msra.mxu0 0
        %542 = vmatprep.subr.bf16.mxu0 0
        %543 = vmatpush2.bf16.msra.mxu0 0
        %544 = vmatprep.mubr.bf16.mxu0 0
        %545 = vmatmul.mubr.bf16.gmra.mxu0 %v440
        %v546 = vpop.f32.mrf.mxu0
        %v547 = vadd.f32 %v462, %v546
        %v548 = vpop.f32.mrf.mxu0
        %v549 = vpop.f32.mrf.mxu0
        %v550 = vpop.f32.mrf.mxu0
        %551 = vdwg.mxu0
        %v552 = vpack.c.bf16 %v547, %v547
        %v553 = vld [vmem:[#allocation2] sm:$0xf]
        %554 = vmatprep.subr.bf16.mxu0 0
        %555 = vmatpush1.bf16.xpose.msra.mxu0 0
        %556 = vmatprep.subr.bf16.mxu0 0
        %557 = vmatpush1.bf16.xpose.msra.mxu0 0
        %558 = vmatprep.subr.bf16.mxu0 0
        %559 = vmatpush1.bf16.xpose.msra.mxu0 0
        %560 = vmatprep.subr.bf16.mxu0 0
        %561 = vmatpush1.bf16.xpose.msra.mxu0 0
        %562 = vmatprep.subr.bf16.mxu0 0
        %563 = vmatpush1.bf16.xpose.msra.mxu0 0
        %564 = vmatprep.subr.bf16.mxu0 0
        %565 = vmatpush1.bf16.xpose.msra.mxu0 0
        %566 = vmatprep.subr.bf16.mxu0 0
        %567 = vmatpush1.bf16.xpose.msra.mxu0 0
        %568 = vmatprep.subr.bf16.mxu0 0
        %569 = vmatpush1.bf16.xpose.msra.mxu0 %v553
        %570 = vmatprep.subr.bf16.mxu0 0
        %571 = vmatpush2.bf16.xpose.msra.mxu0 0
        %572 = vmatprep.subr.bf16.mxu0 0
        %573 = vmatpush2.bf16.xpose.msra.mxu0 0
        %574 = vmatprep.subr.bf16.mxu0 0
        %575 = vmatpush2.bf16.xpose.msra.mxu0 0
        %576 = vmatprep.subr.bf16.mxu0 0
        %577 = vmatpush2.bf16.xpose.msra.mxu0 0
        %578 = vmatprep.subr.bf16.mxu0 0
        %579 = vmatpush2.bf16.xpose.msra.mxu0 0
        %580 = vmatprep.subr.bf16.mxu0 0
        %581 = vmatpush2.bf16.xpose.msra.mxu0 0
        %582 = vmatprep.subr.bf16.mxu0 0
        %583 = vmatpush2.bf16.xpose.msra.mxu0 0
        %584 = vmatprep.subr.bf16.mxu0 0
        %585 = vmatpush2.bf16.xpose.msra.mxu0 0
        %586 = vmatprep.mubr.bf16.mxu0 0
        %587 = vmatmul.mubr.bf16.gmra.mxu0 %v552
        %v588 = vpop.f32.mrf.mxu0
        %v589 = vadd.f32 0.0, %v588
        %v590 = vpop.f32.mrf.mxu0
        %v591 = vpop.f32.mrf.mxu0
        %v592 = vpop.f32.mrf.mxu0
        %593 = vdwg.mxu0
        %vm594 = vcmask 64512
        %v595 = vsel %vm594, %v589, -inf
        %596 = vmax.xlane.f32.xlu0 %v595
        %v597 = vpop.xlane.xlu0 %596
        %v598 = vsub.f32 %v589, %v597
        %v599 = vmul.f32 %v598, 1.442695
        %v600 = vpow.pop %v599
        %v601 = vsel %vm594, %v600, 0.0
        %602 = vadd.xlane.f32.xlu0 %v601
        %v603 = vpop.xlane.xlu0 %602
        %v604 = vpack.c.bf16 %v600, %v600
        %v605 = vld [vmem:[#allocation3] sm:$0xf]
        %v607 = vsel %vm594, %v604, 0
        %vm609 = vcmask 1043456
        %v611 = vsel %vm609, %v605, 0
        %613 = vmatprep.subr.bf16.mxu0 0
        %614 = vmatpush1.bf16.msra.mxu0 0
        %615 = vmatprep.subr.bf16.mxu0 0
        %616 = vmatpush1.bf16.msra.mxu0 0
        %617 = vmatprep.subr.bf16.mxu0 0
        %618 = vmatpush1.bf16.msra.mxu0 0
        %619 = vmatprep.subr.bf16.mxu0 0
        %620 = vmatpush1.bf16.msra.mxu0 0
        %621 = vmatprep.subr.bf16.mxu0 0
        %622 = vmatpush1.bf16.msra.mxu0 0
        %623 = vmatprep.subr.bf16.mxu0 0
        %624 = vmatpush1.bf16.msra.mxu0 0
        %625 = vmatprep.subr.bf16.mxu0 0
        %626 = vmatpush1.bf16.msra.mxu0 0
        %627 = vmatprep.subr.bf16.mxu0 0
        %628 = vmatpush1.bf16.msra.mxu0 %v611
        %629 = vmatprep.subr.bf16.mxu0 0
        %630 = vmatpush2.bf16.msra.mxu0 0
        %631 = vmatprep.subr.bf16.mxu0 0
        %632 = vmatpush2.bf16.msra.mxu0 0
        %633 = vmatprep.subr.bf16.mxu0 0
        %634 = vmatpush2.bf16.msra.mxu0 0
        %635 = vmatprep.subr.bf16.mxu0 0
        %636 = vmatpush2.bf16.msra.mxu0 0
        %637 = vmatprep.subr.bf16.mxu0 0
        %638 = vmatpush2.bf16.msra.mxu0 0
        %639 = vmatprep.subr.bf16.mxu0 0
        %640 = vmatpush2.bf16.msra.mxu0 0
        %641 = vmatprep.subr.bf16.mxu0 0
        %642 = vmatpush2.bf16.msra.mxu0 0
        %643 = vmatprep.subr.bf16.mxu0 0
        %644 = vmatpush2.bf16.msra.mxu0 0
        %645 = vmatprep.mubr.bf16.mxu0 0
        %646 = vmatmul.mubr.bf16.gmra.mxu0 %v607
        %v647 = vpop.f32.mrf.mxu0
        %v648 = vadd.f32 0.0, %v647
        %v649 = vpop.f32.mrf.mxu0
        %v650 = vpop.f32.mrf.mxu0
        %v651 = vpop.f32.mrf.mxu0
        %652 = vdwg.mxu0
        %v653 = vrcp.pop %v603
        %v654 = vmul.f32 %v648, %v653
        %655 = vst [vmem:[%s280] sm:$0xff] %v654
        %s656 = sand.u32 %s142, 1
        %s657 = scalar_lea.sflag [#allocation6], %s656
        %s658 = sand.u32 %s142, 1
        %s659 = smul.addr %s658, 8
        %s660 = scalar_lea.vmem [#allocation10], %s659
        // Predicated region
        $region53: #{tpu_custom_call.1} parent=35 // pred_check
          %p661 = pneg %p152
        $region54: #{tpu_custom_call.1} parent=35 // pred_check_branch
          %663 = sbr.rel (%p661) target = $region56
        $region55: #{tpu_custom_call.1} parent=35 // pred_region
          %s665 = ssub.s32 128, 128
          %666 = vsyncadd %s657, %s665
          %s667 = sadd.s32 %s29, %s28
          %s668 = smul.addr %s667, 128
          %s669 = scalar_lea.hbm %s4, %s668
          %s671 = sshll.u32 %s660, 4
          %s672 = int_to_ptr.vmem [resolvable:$true] %s671
          %674 = dma.vmem_to_hbm [thread:$0]  %s672, 128, %s669, %s657
        $region56: #{tpu_custom_call.1} parent=35 // pred_fallthru
          _
      $region36: #{tpu_custom_call.1} parent=5 // pred_fallthru
        _
      %p675 = scmp.le.s32.totalorder 2, %s19
      // Predicated region
      $region57: #{tpu_custom_call.1} parent=5 // pred_check
        %p676 = pneg %p675
      $region58: #{tpu_custom_call.1} parent=5 // pred_check_branch
        %678 = sbr.rel (%p676) target = $region60
      $region59: #{tpu_custom_call.1} parent=5 // pred_region
        %s679 = ssub.s32 %s19, 2
        // Predicated region
        $region61: #{tpu_custom_call.1} parent=59 // pred_check
          %p680 = pneg %p158
        $region62: #{tpu_custom_call.1} parent=59 // pred_check_branch
          %682 = sbr.rel (%p680) target = $region64
        $region63: #{tpu_custom_call.1} parent=59 // pred_region
          %s683 = sand.u32 %s143, 1
          %s684 = scalar_lea.sflag [#allocation6], %s683
          %s685 = sand.u32 %s143, 1
          %s686 = smul.addr %s685, 8
          %s687 = scalar_lea.vmem [#allocation10], %s686
          %688 = dma.done %s684, 128
        $region64: #{tpu_custom_call.1} parent=59 // pred_fallthru
          _
      $region60: #{tpu_custom_call.1} parent=5 // pred_fallthru
        _
    $region6: #{tpu_custom_call.1} parent=1 // loop_footer
      %s23 = sadd.s32 1, %s19
    $region7: #{tpu_custom_call.1} parent=1 // loop_footer_branch
      %18 = sbr.rel target = $region3
    $region8: #{tpu_custom_call.1} parent=1 // loop_exit
      _
    %689 = vsyncpa [#allocation5], 1
    %s690 = scalar_lea.sflag [#allocation5], 1
    %691 = vsyncpa %s690, 1
    %692 = vsyncpa [#allocation8], 1
    %s693 = scalar_lea.sflag [#allocation8], 1
    %694 = vsyncpa %s693, 1
    %695 = vsyncpa [#allocation6], 1
    %s696 = scalar_lea.sflag [#allocation6], 1
    %697 = vsyncpa %s696, 1

</llo_original>
